<compile_context>
chip_gen: v7x
topology: tpu7x:2x2x1
jax: 0.10.0
libtpu: 0.0.40
codegen_flags: <defaults>
</compile_context>

<pallas_src>
import functools

import jax
import jax.numpy as jnp
from jax.experimental import pallas as pl
from jax.experimental.pallas import tpu as pltpu

LANE = 128      # lane width (last dim)
SUBLANE = 8     # f32 sublane (second-to-last dim)
_MIB = 1024 * 1024


def _round_up(n: int, m: int) -> int:
    return ((n + m - 1) // m) * m


@functools.lru_cache(maxsize=None)
def _vmem_cap_bytes() -> int:
    """~3/4 of physical VMEM: ~48 MiB on v7x (64 MiB), ~96 MiB on v5e/v6e (128 MiB)."""
    try:
        return int(pltpu.get_tpu_info().vmem_capacity_bytes * 3 // 4)
    except Exception:
        return 48 * _MIB        # conservative (v7x-safe) fallback


def _probe_kernel(x_ref, o_ref):
    o_ref[...] = x_ref[...] * 2.0


@functools.lru_cache(maxsize=None)
def _single_buffered_weights_supported() -> bool:
    """Feature-probe: does this jax/Mosaic accept pl.Buffered(1) as a BlockSpec
    pipeline_mode?  Used to keep constant (weight) operands single-buffered so
    resident weights fit v7x's 64 MiB VMEM.  Falls back to default double
    buffering if unsupported (correctness identical)."""
    try:
        x = jnp.zeros((8, 128), jnp.float32)
        fn = pl.pallas_call(
            _probe_kernel,
            out_shape=jax.ShapeDtypeStruct((8, 128), jnp.float32),
            grid=(1,),
            in_specs=[pl.BlockSpec((8, 128), lambda i: (0, 0),
                                   pipeline_mode=pl.Buffered(1))],
            out_specs=pl.BlockSpec((8, 128), lambda i: (0, 0)),
        )
        jax.block_until_ready(fn(x))
        return True
    except Exception:
        return False


def _router_kernel(x_ref, w1_ref, b1_ref, w2_ref, b2_ref, o_ref, *, activation):
    w_dtype = w1_ref.dtype
    # x arrives straight from HBM in its original dtype; .float() + clamp happen
    # here (matches torch), then the MXU is fed in the weights' dtype with f32
    # accumulation.  All non-linearities / biases stay in f32.
    x = jnp.clip(x_ref[...].astype(jnp.float32), -10.0, 10.0)

    # fc1 + activation + clamp
    h = jnp.dot(x.astype(w_dtype), w1_ref[...],
                preferred_element_type=jnp.float32) + b1_ref[...]
    if activation == "relu":
        h = jnp.maximum(h, 0.0)
    elif activation == "tanh":
        h = jnp.tanh(h)
    elif activation == "gelu":
        h = jax.nn.gelu(h, approximate=True)
    else:
        raise ValueError(f"Unsupported activation function: {activation}")
    h = jnp.clip(h, -10.0, 10.0)

    # fc2 + clamp + exact sigmoid gate (exp on EUP, exact divide on VPU — both
    # hidden under the DMA in this HBM-bound kernel).
    logits = jnp.dot(h.astype(w_dtype), w2_ref[...],
                     preferred_element_type=jnp.float32) + b2_ref[...]
    logits = jnp.clip(logits, -10.0, 10.0)
    o_ref[...] = 1.0 / (1.0 + jnp.exp(-logits))
    # TODO(synk): the PyTorch NaN-detection/logging branch is diagnostic only and
    # has no clean in-kernel equivalent; clamped logits cannot produce NaNs here.


def prepare_router_params(w1, b1, w2, b2, compute_dtype=jnp.bfloat16):
    """Call-once weight preprocessing (hoisted out of the per-call path).

    w1: (D, H)  [= fc1.weight.T]     b1: (H,) or (1, H)
    w2: (H, N)  [= fc2.weight.T]     b2: (N,) or (1, N)

    The hidden dim H is zero-padded up to a multiple of 128 (lane-dense MXU
    operands; padded hidden columns stay exactly 0 through relu/clamp and hit
    zero rows of w2, so they never affect the logits).  The output dim N is
    intentionally NOT padded — the output store is the dominant HBM stream.
    Weights are stored in `compute_dtype` (bf16 default; pass jnp.float32 for
    exact parity with the f32 PyTorch reference — the kernel is memory-bound,
    so the extra compute is essentially free).
    """
    w1 = jnp.asarray(w1)
    w2 = jnp.asarray(w2)
    b1 = jnp.asarray(b1).reshape(1, -1)
    b2 = jnp.asarray(b2).reshape(1, -1)
    D, H = w1.shape
    assert w2.shape[0] == H and b1.shape[1] == H and b2.shape[1] == w2.shape[1]

    Hp = _round_up(H, LANE)
    w1p = jnp.pad(w1, ((0, 0), (0, Hp - H))).astype(compute_dtype)
    b1p = jnp.pad(b1.astype(jnp.float32), ((0, 0), (0, Hp - H)))   # pad stays 0
    w2p = jnp.pad(w2, ((0, Hp - H), (0, 0))).astype(compute_dtype)
    b2p = b2.astype(jnp.float32)
    return w1p, b1p, w2p, b2p


@functools.partial(jax.jit, static_argnames=("block_b", "activation"))
def csrf_router_forward(x, w1p, b1p, w2p, b2p, *, block_b=None, activation="relu"):
    """x: (B, D) any float dtype; (w1p, b1p, w2p, b2p) from prepare_router_params.
    Returns gating probabilities (B, N) in float32."""
    B, D = x.shape
    Hp = w1p.shape[1]
    N = w2p.shape[1]
    w_isize = jnp.dtype(w1p.dtype).itemsize
    x_isize = jnp.dtype(x.dtype).itemsize

    # ---- batch tile selection --------------------------------------------
    # Large tiles amortize the ~0.35 us/grid-step overhead; cap at half the
    # batch (when possible) so the "parallel" batch axis always has >=2 steps
    # to feed both v7x TensorCores.
    if block_b is None:
        b8 = _round_up(B, SUBLANE)
        block_b = min(2048, b8, _round_up(pl.cdiv(b8, 2), SUBLANE))
    block_b = max(SUBLANE, _round_up(block_b, SUBLANE))

    # ---- VMEM budget: shrink the tile if it would not fit -----------------
    cap = _vmem_cap_bytes()

    def vmem_est(bb):
        return (2 * bb * (D * x_isize + N * 4)      # double-buffered x / out tiles
                + bb * Hp * 4                       # hidden activations
                + (D * Hp + Hp * N) * w_isize       # resident weights (1 buffer)
                + (Hp + N) * 4)                     # biases

    while block_b > SUBLANE and vmem_est(block_b) > cap // 2:
        block_b = max(SUBLANE, _round_up(block_b // 2, SUBLANE))
    # TODO(synk): if the weights alone exceed the VMEM cap (very large D/H), add
    # a K/H reduction grid axis instead of shrinking the batch tile further.

    Bp = _round_up(B, block_b)
    if Bp != B:
        x = jnp.pad(x, ((0, Bp - B), (0, 0)))       # only when B % block_b != 0
    grid = (Bp // block_b,)

    vmem_limit = min(max(2 * vmem_est(block_b), 16 * _MIB), cap)

    cost = pl.CostEstimate(
        flops=2 * Bp * (D * Hp + Hp * N),
        transcendentals=Bp * N,
        bytes_accessed=(Bp * D * x_isize + Bp * N * 4
                        + (D * Hp + Hp * N) * w_isize + (Hp + N) * 4),
    )

    # Constant-index (weight/bias) operands: single VMEM buffer if supported.
    resident = ({"pipeline_mode": pl.Buffered(1)}
                if _single_buffered_weights_supported() else {})

    out = pl.pallas_call(
        functools.partial(_router_kernel, activation=activation),
        out_shape=jax.ShapeDtypeStruct((Bp, N), jnp.float32),
        grid=grid,
        in_specs=[
            pl.BlockSpec((block_b, D), lambda i: (i, 0)),           # x: batch-tiled
            pl.BlockSpec((D, Hp), lambda i: (0, 0), **resident),    # w1: resident
            pl.BlockSpec((1, Hp), lambda i: (0, 0), **resident),    # b1
            pl.BlockSpec((Hp, N), lambda i: (0, 0), **resident),    # w2
            pl.BlockSpec((1, N), lambda i: (0, 0), **resident),     # b2
        ],
        # N is the full last dim (no lane padding): masked stores, but ~16x less
        # HBM writeback than padding N -> 128, and no post-kernel column slice.
        out_specs=pl.BlockSpec((block_b, N), lambda i: (i, 0)),
        compiler_params=pltpu.CompilerParams(
            dimension_semantics=("parallel",),      # megacore sharding on v7x
            vmem_limit_bytes=int(vmem_limit),
        ),
        cost_estimate=cost,
    )(x, w1p, b1p, w2p, b2p)

    return out[:B] if Bp != B else out


def init_params(key, input_dim, num_subspaces, hidden_dim=None):
    """Deterministic parameter init mirroring the PyTorch module's __init__."""
    if hidden_dim is None:
        hidden_dim = input_dim // 2
    k1, k2, k3, k4 = jax.random.split(key, 4)

    # fc1: PyTorch default U(-1/sqrt(fan_in), 1/sqrt(fan_in))
    bound1 = 1.0 / jnp.sqrt(jnp.float32(input_dim))
    w1 = jax.random.uniform(k1, (input_dim, hidden_dim), jnp.float32, -bound1, bound1)
    b1 = jax.random.uniform(k2, (1, hidden_dim), jnp.float32, -bound1, bound1)

    # fc2: xavier_uniform(gain=0.01), bias U(-0.1, 0.1)
    gain = 0.01
    bound2 = gain * jnp.sqrt(6.0 / (hidden_dim + num_subspaces))
    w2 = jax.random.uniform(k3, (hidden_dim, num_subspaces), jnp.float32, -bound2, bound2)
    b2 = jax.random.uniform(k4, (1, num_subspaces), jnp.float32, -0.1, 0.1)
    return w1, b1, w2, b2


if __name__ == "__main__":
    # Small shapes consistent with (batch_size, input_dim) -> (batch_size, num_subspaces).
    batch, input_dim, num_subspaces = 16, 32, 8
    hidden_dim = input_dim // 2

    key = jax.random.PRNGKey(0)
    kx, kp = jax.random.split(key)
    x = jax.random.normal(kx, (batch, input_dim), jnp.float32) * 4.0   # exercises clamp
    w1, b1, w2, b2 = init_params(kp, input_dim, num_subspaces, hidden_dim)

    # Weight preprocessing hoisted out of the per-call path (done once).
    params = prepare_router_params(w1, b1, w2, b2)

    # Default block_b -> 8 here, so the batch grid has 2 steps even at this size.
    gating_probs = csrf_router_forward(x, *params)
    jax.block_until_ready(gating_probs)

    # Plain-JAX f32 reference of the same forward pass.
    xr = jnp.clip(x.astype(jnp.float32), -10.0, 10.0)
    h = jnp.clip(jnp.maximum(xr @ w1 + b1, 0.0), -10.0, 10.0)
    ref = jax.nn.sigmoid(jnp.clip(h @ w2 + b2, -10.0, 10.0))

    assert gating_probs.shape == (batch, num_subspaces)
    assert bool(jnp.all(jnp.isfinite(gating_probs)))
    # bf16 MXU operands (exact sigmoid) -> small deviation vs the f32 reference.
    assert jnp.allclose(gating_probs, ref, atol=5e-3), "mismatch vs reference"

    print("KERNEL_OK")
</pallas_src>

<mosaic_0001>
module attributes {stable_mosaic.version = 11 : i64} {
  func.func @_router_kernel(%arg0: i32, %arg1: memref<8x32xf32, #tpu.memory_space<vmem>>, %arg2: memref<32x128xbf16, #tpu.memory_space<vmem>>, %arg3: memref<1x128xf32, #tpu.memory_space<vmem>>, %arg4: memref<128x8xbf16, #tpu.memory_space<vmem>>, %arg5: memref<1x8xf32, #tpu.memory_space<vmem>>, %arg6: memref<8x8xf32, #tpu.memory_space<vmem>>) attributes {dimension_semantics = [#tpu.dimension_semantics<parallel>], iteration_bounds = array<i64: 2>, scalar_prefetch = 0 : i64, scratch_operands = 0 : i64, tpu.core_type = #tpu.core_type<tc>, window_params = [{transform_indices = @transform_0, window_bounds = array<i64: 8, 32>}, {pipeline_mode = #tpu.pipeline_mode<synchronous>, transform_indices = @transform_1, window_bounds = array<i64: 32, 128>}, {pipeline_mode = #tpu.pipeline_mode<synchronous>, transform_indices = @transform_2, window_bounds = array<i64: 1, 128>}, {pipeline_mode = #tpu.pipeline_mode<synchronous>, transform_indices = @transform_3, window_bounds = array<i64: 128, 8>}, {pipeline_mode = #tpu.pipeline_mode<synchronous>, transform_indices = @transform_4, window_bounds = array<i64: 1, 8>}, {transform_indices = @transform_5, window_bounds = array<i64: 8, 8>}]} {
    %c0 = arith.constant 0 : index
    %c0_0 = arith.constant 0 : index
    %0 = vector.load %arg1[%c0, %c0_0] : memref<8x32xf32, #tpu.memory_space<vmem>>, vector<8x32xf32>
    %cst = arith.constant -1.000000e+01 : f32
    %cst_1 = arith.constant 1.000000e+01 : f32
    %1 = vector.broadcast %cst : f32 to vector<8x32xf32>
    %2 = arith.maximumf %1, %0 : vector<8x32xf32>
    %3 = vector.broadcast %cst_1 : f32 to vector<8x32xf32>
    %4 = arith.minimumf %3, %2 : vector<8x32xf32>
    %5 = arith.truncf %4 : vector<8x32xf32> to vector<8x32xbf16>
    %c0_2 = arith.constant 0 : index
    %c0_3 = arith.constant 0 : index
    %6 = vector.load %arg2[%c0_2, %c0_3] : memref<32x128xbf16, #tpu.memory_space<vmem>>, vector<32x128xbf16>
    %cst_4 = arith.constant dense<0.000000e+00> : vector<8x128xf32>
    %7 = tpu.matmul %5, %6, %cst_4 {dimension_numbers = #tpu.dot_dimension_numbers<[1], [0], [0], [1], [0, 0, 1, 1], [], []>} : vector<8x32xbf16>, vector<32x128xbf16>, vector<8x128xf32> -> vector<8x128xf32>
    %c0_5 = arith.constant 0 : index
    %c0_6 = arith.constant 0 : index
    %8 = vector.load %arg3[%c0_5, %c0_6] : memref<1x128xf32, #tpu.memory_space<vmem>>, vector<1x128xf32>
    %9 = vector.broadcast %8 : vector<1x128xf32> to vector<8x128xf32>
    %10 = arith.addf %7, %9 : vector<8x128xf32>
    %cst_7 = arith.constant 0.000000e+00 : f32
    %11 = vector.broadcast %cst_7 : f32 to vector<8x128xf32>
    %12 = arith.maximumf %10, %11 : vector<8x128xf32>
    %cst_8 = arith.constant -1.000000e+01 : f32
    %cst_9 = arith.constant 1.000000e+01 : f32
    %13 = vector.broadcast %cst_8 : f32 to vector<8x128xf32>
    %14 = arith.maximumf %13, %12 : vector<8x128xf32>
    %15 = vector.broadcast %cst_9 : f32 to vector<8x128xf32>
    %16 = arith.minimumf %15, %14 : vector<8x128xf32>
    %17 = arith.truncf %16 : vector<8x128xf32> to vector<8x128xbf16>
    %c0_10 = arith.constant 0 : index
    %c0_11 = arith.constant 0 : index
    %18 = vector.load %arg4[%c0_10, %c0_11] : memref<128x8xbf16, #tpu.memory_space<vmem>>, vector<128x8xbf16>
    %cst_12 = arith.constant dense<0.000000e+00> : vector<8x8xf32>
    %19 = tpu.matmul %17, %18, %cst_12 {dimension_numbers = #tpu.dot_dimension_numbers<[1], [0], [0], [1], [0, 0, 1, 1], [], []>} : vector<8x128xbf16>, vector<128x8xbf16>, vector<8x8xf32> -> vector<8x8xf32>
    %c0_13 = arith.constant 0 : index
    %c0_14 = arith.constant 0 : index
    %20 = vector.load %arg5[%c0_13, %c0_14] : memref<1x8xf32, #tpu.memory_space<vmem>>, vector<1x8xf32>
    %21 = vector.broadcast %20 : vector<1x8xf32> to vector<8x8xf32>
    %22 = arith.addf %19, %21 : vector<8x8xf32>
    %cst_15 = arith.constant -1.000000e+01 : f32
    %cst_16 = arith.constant 1.000000e+01 : f32
    %23 = vector.broadcast %cst_15 : f32 to vector<8x8xf32>
    %24 = arith.maximumf %23, %22 : vector<8x8xf32>
    %25 = vector.broadcast %cst_16 : f32 to vector<8x8xf32>
    %26 = arith.minimumf %25, %24 : vector<8x8xf32>
    %cst_17 = arith.constant 0.000000e+00 : f32
    %27 = vector.broadcast %cst_17 : f32 to vector<8x8xf32>
    %28 = arith.subf %27, %26 : vector<8x8xf32>
    %29 = math.exp %28 : vector<8x8xf32>
    %cst_18 = arith.constant 1.000000e+00 : f32
    %30 = vector.broadcast %cst_18 : f32 to vector<8x8xf32>
    %31 = arith.addf %30, %29 : vector<8x8xf32>
    %cst_19 = arith.constant 1.000000e+00 : f32
    %32 = vector.broadcast %cst_19 : f32 to vector<8x8xf32>
    %33 = arith.divf %32, %31 : vector<8x8xf32>
    %c0_20 = arith.constant 0 : index
    %c0_21 = arith.constant 0 : index
    %34 = vector.load %arg6[%c0_20, %c0_21] : memref<8x8xf32, #tpu.memory_space<vmem>>, vector<8x8xf32>
    tpu.vector_store %arg6[%c0_20, %c0_21], %33 {strides = array<i32>} : memref<8x8xf32, #tpu.memory_space<vmem>>, vector<8x8xf32>,
    return
  }
  func.func @transform_0(%arg0: i32) -> (i32, i32) {
    %c0_i32 = arith.constant 0 : i32
    %c0_i32_0 = arith.constant 0 : i32
    return %arg0, %c0_i32 : i32, i32
  }
  func.func @transform_1(%arg0: i32) -> (i32, i32) {
    %c0_i32 = arith.constant 0 : i32
    %c0_i32_0 = arith.constant 0 : i32
    %c0_i32_1 = arith.constant 0 : i32
    return %c0_i32, %c0_i32_0 : i32, i32
  }
  func.func @transform_2(%arg0: i32) -> (i32, i32) {
    %c0_i32 = arith.constant 0 : i32
    %c0_i32_0 = arith.constant 0 : i32
    %c0_i32_1 = arith.constant 0 : i32
    return %c0_i32, %c0_i32_0 : i32, i32
  }
  func.func @transform_3(%arg0: i32) -> (i32, i32) {
    %c0_i32 = arith.constant 0 : i32
    %c0_i32_0 = arith.constant 0 : i32
    %c0_i32_1 = arith.constant 0 : i32
    return %c0_i32, %c0_i32_0 : i32, i32
  }
  func.func @transform_4(%arg0: i32) -> (i32, i32) {
    %c0_i32 = arith.constant 0 : i32
    %c0_i32_0 = arith.constant 0 : i32
    %c0_i32_1 = arith.constant 0 : i32
    return %c0_i32, %c0_i32_0 : i32, i32
  }
  func.func @transform_5(%arg0: i32) -> (i32, i32) {
    %c0_i32 = arith.constant 0 : i32
    %c0_i32_0 = arith.constant 0 : i32
    return %arg0, %c0_i32 : i32, i32
  }
}

</mosaic_0001>

<llo_original>
// kernel: csrf_router_forward.1
$region0: #{csrf_router_forward.1}
  #allocation0 [shape = 'u32[]', space=smem, size = 0x4, offset = 0x4, fixed_abs, tag = 'smem constant byte address 0x4 - core index']
  #allocation1 [shape = 'u32[144,128]{1,0:T(1,128)}', space=vmem, size = 0x12000, scoped, tag = 'internal scratch']
  %s0 = inlined_call_operand.vmem [shape: f32[16,32], index: 0, kind: input, shape index: {}]
  %s1 = inlined_call_operand.vmem [shape: bf16[32,128], index: 1, kind: input, shape index: {}]
  %s2 = inlined_call_operand.vmem [shape: f32[1,128], index: 2, kind: input, shape index: {}]
  %s3 = inlined_call_operand.vmem [shape: bf16[128,8], index: 3, kind: input, shape index: {}]
  %s4 = inlined_call_operand.vmem [shape: f32[1,8], index: 4, kind: input, shape index: {}]
  %s5 = inlined_call_operand.vmem [shape: f32[16,8], index: 5, kind: output, shape index: {}]
  %s6 = sld [smem:[#allocation0]]
  $region53: #{csrf_router_forward.1} parent=0
    _
  %s8 = ssub.s32 1, %s6
  %s9 = scalar_select 0, %s8, %s6
  loop: start=0, step=1, limit=4
  $region2: #{csrf_router_forward.1} parent=0 // loop_pre_header
    _
  $region3: #{csrf_router_forward.1} parent=0 // loop_header
    %s11 = sphi 0, %s15
    %p12 = scmp.ge.s32.totalorder %s11, 4
    %s21 = sphi 0, %s23
    %s24 = sphi 0, %s21
    %s25 = sphi 0, %s24
    %s41 = sphi 0, %s25
    %s45 = sphi 0, %s45
    %s47 = sphi 0, %s45
    %s48 = sphi 0, %s47
    %s62 = sphi 0, %s48
    %s66 = sphi 0, %s66
    %s68 = sphi 0, %s66
    %s69 = sphi 0, %s68
    %s83 = sphi 0, %s69
    %s87 = sphi 0, %s87
    %s89 = sphi 0, %s87
    %s90 = sphi 0, %s89
    %s104 = sphi 0, %s90
    %s108 = sphi 0, %s108
    %s110 = sphi 0, %s108
    %s111 = sphi 0, %s110
    %s125 = sphi 0, %s111
    %s131 = sphi 0, %s133
    %s134 = sphi 0, %s131
    %s135 = sphi 0, %s134
    %s151 = sphi 0, %s135
  $region4: #{csrf_router_forward.1} parent=0 // loop_header_branch
    %14 = sbr.rel (%p12) target = $region8
  $region5: #{csrf_router_forward.1} parent=0 // loop_body
    %s16 = ssub.s32 %s11, 1
    %s17 = ssub.s32 %s11, 2
    %s18 = sadd.s32 %s11, 1
    %s19 = ssub.s32 %s11, %s18
    %p20 = scmp.eq.s32.totalorder %s19, 0
    %s22 = sadd.s32 %s21, 1
    %s23 = scalar_select %p20, %s21, %s22
    %p26 = pneg %p20
    %p27 = scmp.eq.s32.totalorder %s11, 1
    %p28 = por %p26, %p27
    %p29 = scmp.ne.s32.totalorder %s21, %s24
    %p30 = scmp.eq.s32.totalorder %s11, 0
    %p31 = por %p29, %p30
    %p32 = scmp.ne.s32.totalorder %s21, %s24
    %p33 = scmp.eq.s32.totalorder %s16, 1
    %p34 = por %p32, %p33
    %p35 = scmp.ne.s32.totalorder %s24, %s25
    %p36 = scmp.eq.s32.totalorder %s16, 0
    %p37 = por %p35, %p36
    %p38 = scmp.ne.s32.totalorder %s24, %s25
    %p39 = scmp.eq.s32.totalorder %s17, 1
    %p40 = por %p38, %p39
    %p42 = scmp.ne.s32.totalorder %s25, %s41
    %p43 = scmp.eq.s32.totalorder %s17, 0
    %p44 = por %p42, %p43
    %s46 = sadd.s32 %s45, 1
    %p49 = scmp.eq.s32.totalorder %s11, 1
    %p50 = scmp.ne.s32.totalorder %s45, %s47
    %p51 = scmp.eq.s32.totalorder %s11, 0
    %p52 = por %p50, %p51
    %p53 = scmp.ne.s32.totalorder %s45, %s47
    %p54 = scmp.eq.s32.totalorder %s16, 1
    %p55 = por %p53, %p54
    %p56 = scmp.ne.s32.totalorder %s47, %s48
    %p57 = scmp.eq.s32.totalorder %s16, 0
    %p58 = por %p56, %p57
    %p59 = scmp.ne.s32.totalorder %s47, %s48
    %p60 = scmp.eq.s32.totalorder %s17, 1
    %p61 = por %p59, %p60
    %p63 = scmp.ne.s32.totalorder %s48, %s62
    %p64 = scmp.eq.s32.totalorder %s17, 0
    %p65 = por %p63, %p64
    %s67 = sadd.s32 %s66, 1
    %p70 = scmp.eq.s32.totalorder %s11, 1
    %p71 = scmp.ne.s32.totalorder %s66, %s68
    %p72 = scmp.eq.s32.totalorder %s11, 0
    %p73 = por %p71, %p72
    %p74 = scmp.ne.s32.totalorder %s66, %s68
    %p75 = scmp.eq.s32.totalorder %s16, 1
    %p76 = por %p74, %p75
    %p77 = scmp.ne.s32.totalorder %s68, %s69
    %p78 = scmp.eq.s32.totalorder %s16, 0
    %p79 = por %p77, %p78
    %p80 = scmp.ne.s32.totalorder %s68, %s69
    %p81 = scmp.eq.s32.totalorder %s17, 1
    %p82 = por %p80, %p81
    %p84 = scmp.ne.s32.totalorder %s69, %s83
    %p85 = scmp.eq.s32.totalorder %s17, 0
    %p86 = por %p84, %p85
    %s88 = sadd.s32 %s87, 1
    %p91 = scmp.eq.s32.totalorder %s11, 1
    %p92 = scmp.ne.s32.totalorder %s87, %s89
    %p93 = scmp.eq.s32.totalorder %s11, 0
    %p94 = por %p92, %p93
    %p95 = scmp.ne.s32.totalorder %s87, %s89
    %p96 = scmp.eq.s32.totalorder %s16, 1
    %p97 = por %p95, %p96
    %p98 = scmp.ne.s32.totalorder %s89, %s90
    %p99 = scmp.eq.s32.totalorder %s16, 0
    %p100 = por %p98, %p99
    %p101 = scmp.ne.s32.totalorder %s89, %s90
    %p102 = scmp.eq.s32.totalorder %s17, 1
    %p103 = por %p101, %p102
    %p105 = scmp.ne.s32.totalorder %s90, %s104
    %p106 = scmp.eq.s32.totalorder %s17, 0
    %p107 = por %p105, %p106
    %s109 = sadd.s32 %s108, 1
    %p112 = scmp.eq.s32.totalorder %s11, 1
    %p113 = scmp.ne.s32.totalorder %s108, %s110
    %p114 = scmp.eq.s32.totalorder %s11, 0
    %p115 = por %p113, %p114
    %p116 = scmp.ne.s32.totalorder %s108, %s110
    %p117 = scmp.eq.s32.totalorder %s16, 1
    %p118 = por %p116, %p117
    %p119 = scmp.ne.s32.totalorder %s110, %s111
    %p120 = scmp.eq.s32.totalorder %s16, 0
    %p121 = por %p119, %p120
    %p122 = scmp.ne.s32.totalorder %s110, %s111
    %p123 = scmp.eq.s32.totalorder %s17, 1
    %p124 = por %p122, %p123
    %p126 = scmp.ne.s32.totalorder %s111, %s125
    %p127 = scmp.eq.s32.totalorder %s17, 0
    %p128 = por %p126, %p127
    %s129 = ssub.s32 %s11, %s18
    %p130 = scmp.eq.s32.totalorder %s129, 0
    %s132 = sadd.s32 %s131, 1
    %s133 = scalar_select %p130, %s131, %s132
    %p136 = pneg %p130
    %p137 = scmp.eq.s32.totalorder %s11, 1
    %p138 = por %p136, %p137
    %p139 = scmp.ne.s32.totalorder %s131, %s134
    %p140 = scmp.eq.s32.totalorder %s11, 0
    %p141 = por %p139, %p140
    %p142 = scmp.ne.s32.totalorder %s131, %s134
    %p143 = scmp.eq.s32.totalorder %s16, 1
    %p144 = por %p142, %p143
    %p145 = scmp.ne.s32.totalorder %s134, %s135
    %p146 = scmp.eq.s32.totalorder %s16, 0
    %p147 = por %p145, %p146
    %p148 = scmp.ne.s32.totalorder %s134, %s135
    %p149 = scmp.eq.s32.totalorder %s17, 1
    %p150 = por %p148, %p149
    %p152 = scmp.ne.s32.totalorder %s135, %s151
    %p153 = scmp.eq.s32.totalorder %s17, 0
    %p154 = por %p152, %p153
    %p155 = scmp.le.s32.totalorder 1, %s11
    %p156 = scmp.lt.s32.totalorder %s11, 3
    %p157 = pnand %p155, %p156
    %p158 = pneg %p157
    // Predicated region
    $region9: #{csrf_router_forward.1} parent=5 // pred_check
      _
    $region10: #{csrf_router_forward.1} parent=5 // pred_check_branch
      %160 = sbr.rel (%p157) target = $region12
    $region11: #{csrf_router_forward.1} parent=5 // pred_region
      %s161 = ssub.s32 %s11, 1
      // Predicated region
      $region13: #{csrf_router_forward.1} parent=11 // pred_check
        %p162 = pneg %p58
      $region14: #{csrf_router_forward.1} parent=11 // pred_check_branch
        %164 = sbr.rel (%p162) target = $region16
      $region15: #{csrf_router_forward.1} parent=11 // pred_region
        _
      $region16: #{csrf_router_forward.1} parent=11 // pred_fallthru
        _
      // Predicated region
      $region17: #{csrf_router_forward.1} parent=11 // pred_check
        %p165 = pneg %p79
      $region18: #{csrf_router_forward.1} parent=11 // pred_check_branch
        %167 = sbr.rel (%p165) target = $region20
      $region19: #{csrf_router_forward.1} parent=11 // pred_region
        _
      $region20: #{csrf_router_forward.1} parent=11 // pred_fallthru
        _
      // Predicated region
      $region21: #{csrf_router_forward.1} parent=11 // pred_check
        %p168 = pneg %p100
      $region22: #{csrf_router_forward.1} parent=11 // pred_check_branch
        %170 = sbr.rel (%p168) target = $region24
      $region23: #{csrf_router_forward.1} parent=11 // pred_region
        _
      $region24: #{csrf_router_forward.1} parent=11 // pred_fallthru
        _
      // Predicated region
      $region25: #{csrf_router_forward.1} parent=11 // pred_check
        %p171 = pneg %p121
      $region26: #{csrf_router_forward.1} parent=11 // pred_check_branch
        %173 = sbr.rel (%p171) target = $region28
      $region27: #{csrf_router_forward.1} parent=11 // pred_region
        _
      $region28: #{csrf_router_forward.1} parent=11 // pred_fallthru
        _
    $region12: #{csrf_router_forward.1} parent=5 // pred_fallthru
      _
    %p174 = scmp.lt.s32.totalorder %s11, 2
    // Predicated region
    $region29: #{csrf_router_forward.1} parent=5 // pred_check
      %p175 = pneg %p174
    $region30: #{csrf_router_forward.1} parent=5 // pred_check_branch
      %177 = sbr.rel (%p175) target = $region32
    $region31: #{csrf_router_forward.1} parent=5 // pred_region
      // Predicated region
      $region33: #{csrf_router_forward.1} parent=31 // pred_check
        %p178 = pneg %p31
      $region34: #{csrf_router_forward.1} parent=31 // pred_check_branch
        %180 = sbr.rel (%p178) target = $region36
      $region35: #{csrf_router_forward.1} parent=31 // pred_region
        %p181 = scmp.lt.s32.totalorder %s11, 1
        %s182 = scalar_select %p181, %s11, 1
        %s183 = smul.addr %s182, 8
        %s184 = scalar_lea.vmem %s0, %s183
      $region36: #{csrf_router_forward.1} parent=31 // pred_fallthru
        _
    $region32: #{csrf_router_forward.1} parent=5 // pred_fallthru
      _
    %p185 = scmp.le.s32.totalorder 1, %s11
    %p186 = scmp.lt.s32.totalorder %s11, 3
    %p187 = pnand %p185, %p186
    %p188 = pneg %p187
    // Predicated region
    $region37: #{csrf_router_forward.1} parent=5 // pred_check
      _
    $region38: #{csrf_router_forward.1} parent=5 // pred_check_branch
      %190 = sbr.rel (%p187) target = $region40
    $region39: #{csrf_router_forward.1} parent=5 // pred_region
      %s191 = ssub.s32 %s11, 1
      %p192 = scmp.lt.s32.totalorder %s16, 1
      %s193 = scalar_select %p192, %s16, 1
      %s194 = smul.addr %s193, 8
      %s195 = scalar_lea.vmem %s0, %s194
      %p196 = pneg %p37
      %p197 = pneg %p34
      %p198 = pneg %p58
      %p199 = pneg %p55
      %p200 = pneg %p79
      %p201 = pneg %p76
      %p202 = pneg %p100
      %p203 = pneg %p97
      %p204 = pneg %p121
      %p205 = pneg %p118
      %p206 = pneg %p147
      %p207 = pneg %p144
      %p208 = scmp.lt.s32.totalorder %s16, 1
      %s209 = scalar_select %p208, %s16, 1
      %s210 = smul.addr %s209, 8
      %s211 = scalar_lea.vmem %s5, %s210
      %p212 = scmp.lt.s32.totalorder %s16, 1
      %s213 = scalar_select %p212, %s16, 1
      %s214 = smul.addr %s213, 8
      %s215 = scalar_lea.vmem %s0, %s214
      %p216 = scmp.lt.s32.totalorder %s16, 1
      %s217 = scalar_select %p216, %s16, 1
      %s218 = smul.addr %s217, 8
      %s219 = scalar_lea.vmem %s5, %s218
      %v221 = vld [vmem:[%s215] sm:$0xff]
      %v222 = vmax.f32 %v221, -10.0
      %v223 = vmin.f32 %v222, 10.0
      %v224 = vpack.c.bf16 %v223, %v223
      %v225 = vld [vmem:[%s1] sm:$0xf]
      %v226 = vld [vmem:[%s1 + $0x4] sm:$0xf]
      %v227 = vld [vmem:[%s1 + $0x8] sm:$0xf]
      %v228 = vld [vmem:[%s1 + $0xc] sm:$0xf]
      %v229 = vld [vmem:[%s2] sm:$0x1]
      %v231 = vlaneseq
      %v232 = vshrl.u32 %v231, 7
      %v233 = vsub.s32 0, %v232
      %v234 = vrot.slane %v229, %v233
      %v240 = vunpack.c.l.b16 %v225
      %v241 = vunpack.c.l.b16 %v226
      %v242 = vunpack.c.l.b16 %v227
      %v243 = vunpack.c.l.b16 %v228
      %v244 = vpack.c.b16 %v241, %v240
      %v245 = vpack.c.b16 %v243, %v242
      %vm248 = vcmask 261120
      %v250 = vsel %vm248, %v224, 0
      %252 = vmatprep.subr.bf16.mxu0 0
      %253 = vmatpush1.bf16.msra.mxu0 %v244
      %254 = vmatprep.subr.bf16.mxu0 0
      %255 = vmatpush1.bf16.msra.mxu0 %v245
      %256 = vmatprep.subr.bf16.mxu0 0
      %257 = vmatpush1.bf16.msra.mxu0 0
      %258 = vmatprep.subr.bf16.mxu0 0
      %259 = vmatpush1.bf16.msra.mxu0 0
      %260 = vmatprep.subr.bf16.mxu0 0
      %261 = vmatpush1.bf16.msra.mxu0 0
      %262 = vmatprep.subr.bf16.mxu0 0
      %263 = vmatpush1.bf16.msra.mxu0 0
      %264 = vmatprep.subr.bf16.mxu0 0
      %265 = vmatpush1.bf16.msra.mxu0 0
      %266 = vmatprep.subr.bf16.mxu0 0
      %267 = vmatpush1.bf16.msra.mxu0 0
      %268 = vmatprep.subr.bf16.mxu0 0
      %269 = vmatpush1.bf16.msra.mxu0 0
      %270 = vmatprep.subr.bf16.mxu0 0
      %271 = vmatpush1.bf16.msra.mxu0 0
      %272 = vmatprep.subr.bf16.mxu0 0
      %273 = vmatpush1.bf16.msra.mxu0 0
      %274 = vmatprep.subr.bf16.mxu0 0
      %275 = vmatpush1.bf16.msra.mxu0 0
      %276 = vmatprep.subr.bf16.mxu0 0
      %277 = vmatpush1.bf16.msra.mxu0 0
      %278 = vmatprep.subr.bf16.mxu0 0
      %279 = vmatpush1.bf16.msra.mxu0 0
      %280 = vmatprep.subr.bf16.mxu0 0
      %281 = vmatpush1.bf16.msra.mxu0 0
      %282 = vmatprep.subr.bf16.mxu0 0
      %283 = vmatpush1.bf16.msra.mxu0 0
      %284 = vmatprep.mubr.bf16.mxu0 0
      %285 = vmatmul.mubr.bf16.gmra.mrb[0].mxu0 %v250
      %v286 = vpop.f32.mrb[0].mxu0
      %v287 = vadd.f32 %v234, %v286
      %v288 = vpop.f32.mrb[0].mxu0
      %v289 = vpop.f32.mrb[0].mxu0
      %v290 = vpop.f32.mrb[0].mxu0
      %291 = vdwg.mxu0
      %v292 = vmax.f32 %v287, 0.0
      %v293 = vmax.f32 %v292, -10.0
      %v294 = vmin.f32 %v293, 10.0
      %v295 = vpack.c.bf16 %v294, %v294
      %v296 = vld [vmem:[%s3] sm:$0xf]
      %v297 = vld [vmem:[%s3 + $0x4] sm:$0xf]
      %v298 = vld [vmem:[%s3 + $0x8] sm:$0xf]
      %v299 = vld [vmem:[%s3 + $0xc] sm:$0xf]
      %v300 = vld [vmem:[%s3 + $0x10] sm:$0xf]
      %v301 = vld [vmem:[%s3 + $0x14] sm:$0xf]
      %v302 = vld [vmem:[%s3 + $0x18] sm:$0xf]
      %v303 = vld [vmem:[%s3 + $0x1c] sm:$0xf]
      %v304 = vld [vmem:[%s3 + $0x20] sm:$0xf]
      %v305 = vld [vmem:[%s3 + $0x24] sm:$0xf]
      %v306 = vld [vmem:[%s3 + $0x28] sm:$0xf]
      %v307 = vld [vmem:[%s3 + $0x2c] sm:$0xf]
      %v308 = vld [vmem:[%s3 + $0x30] sm:$0xf]
      %v309 = vld [vmem:[%s3 + $0x34] sm:$0xf]
      %v310 = vld [vmem:[%s3 + $0x38] sm:$0xf]
      %v311 = vld [vmem:[%s3 + $0x3c] sm:$0xf]
      %v312 = vld [vmem:[%s4] sm:$0x1]
      %v314 = vlaneseq
      %v315 = vshrl.u32 %v314, 7
      %v316 = vsub.s32 0, %v315
      %v317 = vrot.slane %v312, %v316
      %v335 = vunpack.c.l.b16 %v296
      %v336 = vunpack.c.l.b16 %v297
      %v337 = vunpack.c.l.b16 %v298
      %v338 = vunpack.c.l.b16 %v299
      %v339 = vunpack.c.l.b16 %v300
      %v340 = vunpack.c.l.b16 %v301
      %v341 = vunpack.c.l.b16 %v302
      %v342 = vunpack.c.l.b16 %v303
      %v343 = vunpack.c.l.b16 %v304
      %v344 = vunpack.c.l.b16 %v305
      %v345 = vunpack.c.l.b16 %v306
      %v346 = vunpack.c.l.b16 %v307
      %v347 = vunpack.c.l.b16 %v308
      %v348 = vunpack.c.l.b16 %v309
      %v349 = vunpack.c.l.b16 %v310
      %v350 = vunpack.c.l.b16 %v311
      %v351 = vpack.c.b16 %v336, %v335
      %v352 = vpack.c.b16 %v338, %v337
      %v353 = vpack.c.b16 %v340, %v339
      %v354 = vpack.c.b16 %v342, %v341
      %v355 = vpack.c.b16 %v344, %v343
      %v356 = vpack.c.b16 %v346, %v345
      %v357 = vpack.c.b16 %v348, %v347
      %v358 = vpack.c.b16 %v350, %v349
      %367 = vmatprep.subr.bf16.mxu0 0
      %368 = vmatpush1.bf16.msra.mxu0 %v351
      %369 = vmatprep.subr.bf16.mxu0 0
      %370 = vmatpush1.bf16.msra.mxu0 %v352
      %371 = vmatprep.subr.bf16.mxu0 0
      %372 = vmatpush1.bf16.msra.mxu0 %v353
      %373 = vmatprep.subr.bf16.mxu0 0
      %374 = vmatpush1.bf16.msra.mxu0 %v354
      %375 = vmatprep.subr.bf16.mxu0 0
      %376 = vmatpush1.bf16.msra.mxu0 %v355
      %377 = vmatprep.subr.bf16.mxu0 0
      %378 = vmatpush1.bf16.msra.mxu0 %v356
      %379 = vmatprep.subr.bf16.mxu0 0
      %380 = vmatpush1.bf16.msra.mxu0 %v357
      %381 = vmatprep.subr.bf16.mxu0 0
      %382 = vmatpush1.bf16.msra.mxu0 %v358
      %383 = vmatprep.subr.bf16.mxu0 0
      %384 = vmatpush1.bf16.msra.mxu0 0
      %385 = vmatprep.subr.bf16.mxu0 0
      %386 = vmatpush1.bf16.msra.mxu0 0
      %387 = vmatprep.subr.bf16.mxu0 0
      %388 = vmatpush1.bf16.msra.mxu0 0
      %389 = vmatprep.subr.bf16.mxu0 0
      %390 = vmatpush1.bf16.msra.mxu0 0
      %391 = vmatprep.subr.bf16.mxu0 0
      %392 = vmatpush1.bf16.msra.mxu0 0
      %393 = vmatprep.subr.bf16.mxu0 0
      %394 = vmatpush1.bf16.msra.mxu0 0
      %395 = vmatprep.subr.bf16.mxu0 0
      %396 = vmatpush1.bf16.msra.mxu0 0
      %397 = vmatprep.subr.bf16.mxu0 0
      %398 = vmatpush1.bf16.msra.mxu0 0
      %399 = vmatprep.mubr.bf16.mxu0 0
      %400 = vmatmul.mubr.bf16.gmra.mrb[0].mxu0 %v295
      %v401 = vpop.f32.mrb[0].mxu0
      %v402 = vadd.f32 %v317, %v401
      %v403 = vpop.f32.mrb[0].mxu0
      %v404 = vpop.f32.mrb[0].mxu0
      %v405 = vpop.f32.mrb[0].mxu0
      %406 = vdwg.mxu0
      %v407 = vmax.f32 %v402, -10.0
      %v408 = vmin.f32 %v407, 10.0
      %v409 = vsub.f32 0.0, %v408
      %v410 = vmul.f32 %v409, 1.442695
      %v411 = vpow.pop %v410
      %v412 = vadd.f32 %v411, 1.0
      %v413 = vrcp.pop %v412
      %v414 = vmul.f32 1.0, %v413
      %vm415 = vcmask 64512
      %416 = vst.msk [vmem:[%s219] sm:$0xff] %vm415, %v414
      %p417 = scmp.lt.s32.totalorder %s16, 1
      %s418 = scalar_select %p417, %s16, 1
      %s419 = smul.addr %s418, 8
      %s420 = scalar_lea.vmem %s5, %s419
      // Predicated region
      $region41: #{csrf_router_forward.1} parent=39 // pred_check
        %p421 = pneg %p144
      $region42: #{csrf_router_forward.1} parent=39 // pred_check_branch
        %423 = sbr.rel (%p421) target = $region44
      $region43: #{csrf_router_forward.1} parent=39 // pred_region
        _
      $region44: #{csrf_router_forward.1} parent=39 // pred_fallthru
        _
    $region40: #{csrf_router_forward.1} parent=5 // pred_fallthru
      _
    %p424 = scmp.le.s32.totalorder 2, %s11
    // Predicated region
    $region45: #{csrf_router_forward.1} parent=5 // pred_check
      %p425 = pneg %p424
    $region46: #{csrf_router_forward.1} parent=5 // pred_check_branch
      %427 = sbr.rel (%p425) target = $region48
    $region47: #{csrf_router_forward.1} parent=5 // pred_region
      %s428 = ssub.s32 %s11, 2
      // Predicated region
      $region49: #{csrf_router_forward.1} parent=47 // pred_check
        %p429 = pneg %p150
      $region50: #{csrf_router_forward.1} parent=47 // pred_check_branch
        %431 = sbr.rel (%p429) target = $region52
      $region51: #{csrf_router_forward.1} parent=47 // pred_region
        %p432 = scmp.lt.s32.totalorder %s17, 1
        %s433 = scalar_select %p432, %s17, 1
        %s434 = smul.addr %s433, 8
        %s435 = scalar_lea.vmem %s5, %s434
      $region52: #{csrf_router_forward.1} parent=47 // pred_fallthru
        _
    $region48: #{csrf_router_forward.1} parent=5 // pred_fallthru
      _
  $region6: #{csrf_router_forward.1} parent=0 // loop_footer
    %s15 = sadd.s32 1, %s11
  $region7: #{csrf_router_forward.1} parent=0 // loop_footer_branch
    %10 = sbr.rel target = $region3
  $region8: #{csrf_router_forward.1} parent=0 // loop_exit
    _

</llo_original>
